<compile_context>
chip_gen: v6e
topology: v6e:2x2x1
jax: 0.10.0
libtpu: 0.0.40
codegen_flags: <defaults>
</compile_context>

<pallas_src>
import functools

import jax
import jax.numpy as jnp
from jax import lax
from jax.experimental import pallas as pl
from jax.experimental.pallas import tpu as pltpu

_LANE = 128      # f32 lane width
_SUBLANE = 8     # f32 sublane width


def _round_up(n, m):
    return ((n + m - 1) // m) * m


def _mlp_kernel(*refs, num_layers, matmul_dtype):
    """Fused MLP.

    refs = (x_ref, w0, b0, ..., w_{L-1}, b_{L-1}, o_ref)
    Hidden layers: tanh(h @ W_l + b_l), VMEM-resident, lane-padded.
    Readout (last layer): computed transposed -> (output_size, tb) so the
    store is unpadded and lane-dense along the batch axis.
    """
    x_ref = refs[0]
    o_ref = refs[-1]
    wb = refs[1:-1]

    h = x_ref[...].astype(jnp.float32)

    # Hidden layers: MXU matmul (f32 accumulate) + VPU bias add + EUP tanh.
    for l in range(num_layers - 1):
        w = wb[2 * l][...]
        b = wb[2 * l + 1][...].astype(jnp.float32)
        if matmul_dtype is not None:
            lhs, rhs = h.astype(matmul_dtype), w.astype(matmul_dtype)
        else:
            lhs, rhs = h, w
        h = jnp.tanh(jnp.dot(lhs, rhs, preferred_element_type=jnp.float32) + b)

    # Readout, transposed: w is (out, hidden_pad), h is (tb, hidden_pad);
    # contract the feature dims ('od,bd->ob') -> (out, tb).
    w = wb[2 * (num_layers - 1)][...]
    b = wb[2 * (num_layers - 1) + 1][...].astype(jnp.float32)   # (out, 1)
    if matmul_dtype is not None:
        lhs, rhs = w.astype(matmul_dtype), h.astype(matmul_dtype)
    else:
        lhs, rhs = w, h
    y = lax.dot_general(lhs, rhs, (((1,), (1,)), ((), ())),
                        preferred_element_type=jnp.float32) + b
    o_ref[...] = y.astype(o_ref.dtype)


def init_feedforward_params(key, input_dim, hidden_sizes, output_size,
                            dtype=jnp.float32):
    """torch.nn.Linear-style uniform(-1/sqrt(fan_in), 1/sqrt(fan_in)) init.

    Returns a list of (W [in, out], b [1, out]); the last entry is the readout.
    """
    sizes = [input_dim] + list(hidden_sizes) + [output_size]
    params = []
    for fan_in, fan_out in zip(sizes[:-1], sizes[1:]):
        key, kw, kb = jax.random.split(key, 3)
        bound = 1.0 / (fan_in ** 0.5)
        w = jax.random.uniform(kw, (fan_in, fan_out), dtype, -bound, bound)
        b = jax.random.uniform(kb, (1, fan_out), dtype, -bound, bound)
        params.append((w, b))
    return params


def prepare_feedforward_params(params):
    """Lay out params for the fused kernel.

    * Hidden layers: W zero-padded to (prev_pad, round_up(out, 128)),
      b -> (1, out_pad).  Layer 0 keeps its REAL input dim (no x padding).
    * Readout: W stored transposed and UNPADDED on the output dim,
      (out, hidden_pad); b -> (out, 1).
    Zero-padding is exact: padded units have zero weight+bias -> tanh(0)=0 ->
    multiplied by zero rows of the next layer.
    Returns (padded_params, layer_dims) with layer_dims the real (in, out).
    """
    layer_dims = [(w.shape[0], w.shape[1]) for w, _ in params]
    num_layers = len(params)
    padded = []
    prev_pad = params[0][0].shape[0]          # real input dim, never padded
    for l, (w, b) in enumerate(params):
        ip, op = w.shape
        if l < num_layers - 1:
            op_pad = _round_up(op, _LANE)
            w_p = jnp.zeros((prev_pad, op_pad), w.dtype).at[:ip, :op].set(w)
            b_p = jnp.zeros((1, op_pad), b.dtype).at[:, :op].set(
                b.reshape(1, op))
            prev_pad = op_pad
        else:
            # Readout: transposed, output dim unpadded -> lane-dense store.
            w_p = jnp.zeros((op, prev_pad), w.dtype).at[:, :ip].set(w.T)
            b_p = b.reshape(op, 1)
        padded.append((w_p, b_p))
    return padded, layer_dims


def _choose_batch_tile(B, batch_tile):
    """Pick the batch tile.

    Tiny batches run as a single tile with NO padding at all (block dims equal
    the full array dims).  Moderate/large batches get >= 2 grid steps (v7x
    megacore) with a 128-multiple tile so the transposed output store stays
    unmasked, capped at `batch_tile` to bound VMEM.
    """
    if B <= 256:
        return B
    tb = _round_up(pl.cdiv(B, 2), _LANE)
    return max(_LANE, min(_round_up(batch_tile, _LANE), tb))


def feedforward_forward(x, prepared, *, batch_tile=1024, matmul_dtype=None):
    """Fused forward pass.  x: [B, input_dim] (unpadded).  Returns [B, out]."""
    padded_params, layer_dims = prepared
    B, in_dim = x.shape
    assert in_dim == layer_dims[0][0]
    output_size = layer_dims[-1][1]
    num_layers = len(padded_params)
    dtype = x.dtype
    itemsize = jnp.dtype(dtype).itemsize

    tb = _choose_batch_tile(B, batch_tile)
    b_total = _round_up(B, tb)

    # Batch padding only when B % tb != 0 (never on the feature dim).
    if b_total != B:
        x_p = jnp.zeros((b_total, in_dim), dtype).at[:B, :].set(x)
    else:
        x_p = x

    grid = (b_total // tb,)

    in_specs = [pl.BlockSpec((tb, in_dim), lambda i: (i, 0))]
    flat_params = []
    param_bytes = 0
    for w, b in padded_params:
        # Full-array blocks; index_map (0,0) -> weights stay VMEM-resident.
        in_specs.append(pl.BlockSpec(w.shape, lambda i: (0, 0)))
        in_specs.append(pl.BlockSpec(b.shape, lambda i: (0, 0)))
        flat_params.extend([w, b])
        param_bytes += (w.size + b.size) * jnp.dtype(w.dtype).itemsize

    # Transposed, unpadded output: (output_size, b_total), lane dim = batch.
    out_specs = pl.BlockSpec((output_size, tb), lambda i: (0, i))

    # Cost estimate from REAL (unpadded) dims -- advisory for XLA overlap.
    flops = sum(2 * B * ip * op for ip, op in layer_dims)
    transcendentals = B * sum(op for _, op in layer_dims[:-1])
    bytes_accessed = (B * in_dim * itemsize
                      + sum((ip * op + op) * itemsize for ip, op in layer_dims)
                      + B * output_size * itemsize)

    # VMEM budget: resident weights (x2 for the pipeline's buffer pair),
    # double-buffered x / out tiles, and the widest f32 activation tile.
    max_hidden_pad = max(w.shape[1] for w, _ in padded_params[:-1])
    vmem_need = 2 * param_bytes
    vmem_need += 2 * tb * in_dim * itemsize + 2 * output_size * tb * itemsize
    vmem_need += 2 * tb * max_hidden_pad * 4
    vmem_limit = int(min(max(vmem_need + (8 << 20), 32 << 20), 64 << 20))
    # TODO(synk): if hidden widths ever grow so resident weights approach
    # ~48 MiB, switch to a K-tiled grid (v7x has only 64 MiB VMEM per core)
    # and pad feature dims to 256 on v6e/v7x for full MXU-width passes.

    kernel = functools.partial(_mlp_kernel, num_layers=num_layers,
                               matmul_dtype=matmul_dtype)

    out_t = pl.pallas_call(
        kernel,
        out_shape=jax.ShapeDtypeStruct((output_size, b_total), dtype),
        grid=grid,
        in_specs=in_specs,
        out_specs=out_specs,
        compiler_params=pltpu.CompilerParams(
            dimension_semantics=("parallel",),
            vmem_limit_bytes=vmem_limit),
        cost_estimate=pl.CostEstimate(
            flops=int(flops),
            transcendentals=int(transcendentals),
            bytes_accessed=int(bytes_accessed)),
    )(x_p, *flat_params)

    # (output_size, b_total) -> (B, output_size); tiny slice + transpose.
    return out_t[:, :B].T


if __name__ == "__main__":
    # Shapes consistent with an SAC MLP: input_dim=16, hidden=[32, 32], out=4.
    input_dim, hidden_sizes, output_size = 16, [32, 32], 4

    key = jax.random.PRNGKey(0)
    key, kp = jax.random.split(key)
    params = init_feedforward_params(kp, input_dim, hidden_sizes, output_size)
    prepared = prepare_feedforward_params(params)

    # Pure-JAX reference of the unpadded math (== torch Feedforward.forward).
    def reference(xv):
        h = xv
        for w, b in params[:-1]:
            h = jnp.tanh(h @ w + b)
        w, b = params[-1]
        return h @ w + b

    # Tiny SAC-sized batch: single tile, zero padding anywhere.
    key, kx = jax.random.split(key)
    x_small = jax.random.normal(kx, (2, input_dim), dtype=jnp.float32)
    out_small = jax.block_until_ready(feedforward_forward(x_small, prepared))
    assert out_small.shape == (2, output_size)
    assert jnp.allclose(out_small, reference(x_small), atol=1e-5, rtol=1e-5)

    # Moderate batch: exercises the multi-tile (grid=2) + batch-pad path.
    key, kx2 = jax.random.split(key)
    x_mid = jax.random.normal(kx2, (300, input_dim), dtype=jnp.float32)
    out_mid = jax.block_until_ready(feedforward_forward(x_mid, prepared))
    assert out_mid.shape == (300, output_size)
    assert jnp.allclose(out_mid, reference(x_mid), atol=1e-5, rtol=1e-5)

    # TODO(synk): dot_prod_last_layer / save_checkpoint / load_checkpoint are
    # not part of forward() and are not implemented here.  The bf16 matmul
    # fast path (matmul_dtype=jnp.bfloat16) requires a relaxed tolerance.

    print("KERNEL_OK")
</pallas_src>

<mosaic_0001>
module attributes {stable_mosaic.version = 11 : i64} {
  func.func @_mlp_kernel(%arg0: i32, %arg1: memref<2x16xf32, #tpu.memory_space<vmem>>, %arg2: memref<16x128xf32, #tpu.memory_space<vmem>>, %arg3: memref<1x128xf32, #tpu.memory_space<vmem>>, %arg4: memref<128x128xf32, #tpu.memory_space<vmem>>, %arg5: memref<1x128xf32, #tpu.memory_space<vmem>>, %arg6: memref<4x128xf32, #tpu.memory_space<vmem>>, %arg7: memref<4x1xf32, #tpu.memory_space<vmem>>, %arg8: memref<4x2xf32, #tpu.memory_space<vmem>>) attributes {dimension_semantics = [#tpu.dimension_semantics<parallel>], iteration_bounds = array<i64: 1>, scalar_prefetch = 0 : i64, scratch_operands = 0 : i64, tpu.core_type = #tpu.core_type<tc>, window_params = [{transform_indices = @transform_0, window_bounds = array<i64: 2, 16>}, {pipeline_mode = #tpu.pipeline_mode<synchronous>, transform_indices = @transform_1, window_bounds = array<i64: 16, 128>}, {pipeline_mode = #tpu.pipeline_mode<synchronous>, transform_indices = @transform_2, window_bounds = array<i64: 1, 128>}, {pipeline_mode = #tpu.pipeline_mode<synchronous>, transform_indices = @transform_3, window_bounds = array<i64: 128, 128>}, {pipeline_mode = #tpu.pipeline_mode<synchronous>, transform_indices = @transform_4, window_bounds = array<i64: 1, 128>}, {pipeline_mode = #tpu.pipeline_mode<synchronous>, transform_indices = @transform_5, window_bounds = array<i64: 4, 128>}, {pipeline_mode = #tpu.pipeline_mode<synchronous>, transform_indices = @transform_6, window_bounds = array<i64: 4, 1>}, {transform_indices = @transform_7, window_bounds = array<i64: 4, 2>}]} {
    %c0 = arith.constant 0 : index
    %c0_0 = arith.constant 0 : index
    %0 = vector.load %arg1[%c0, %c0_0] : memref<2x16xf32, #tpu.memory_space<vmem>>, vector<2x16xf32>
    %c0_1 = arith.constant 0 : index
    %c0_2 = arith.constant 0 : index
    %1 = vector.load %arg2[%c0_1, %c0_2] : memref<16x128xf32, #tpu.memory_space<vmem>>, vector<16x128xf32>
    %c0_3 = arith.constant 0 : index
    %c0_4 = arith.constant 0 : index
    %2 = vector.load %arg3[%c0_3, %c0_4] : memref<1x128xf32, #tpu.memory_space<vmem>>, vector<1x128xf32>
    %cst = arith.constant dense<0.000000e+00> : vector<2x128xf32>
    %3 = tpu.matmul %0, %1, %cst {dimension_numbers = #tpu.dot_dimension_numbers<[1], [0], [0], [1], [0, 0, 1, 1], [], []>} : vector<2x16xf32>, vector<16x128xf32>, vector<2x128xf32> -> vector<2x128xf32>
    %4 = vector.broadcast %2 : vector<1x128xf32> to vector<2x128xf32>
    %5 = arith.addf %3, %4 : vector<2x128xf32>
    %6 = math.tanh %5 : vector<2x128xf32>
    %c0_5 = arith.constant 0 : index
    %c0_6 = arith.constant 0 : index
    %7 = vector.load %arg4[%c0_5, %c0_6] : memref<128x128xf32, #tpu.memory_space<vmem>>, vector<128x128xf32>
    %c0_7 = arith.constant 0 : index
    %c0_8 = arith.constant 0 : index
    %8 = vector.load %arg5[%c0_7, %c0_8] : memref<1x128xf32, #tpu.memory_space<vmem>>, vector<1x128xf32>
    %cst_9 = arith.constant dense<0.000000e+00> : vector<2x128xf32>
    %9 = tpu.matmul %6, %7, %cst_9 {dimension_numbers = #tpu.dot_dimension_numbers<[1], [0], [0], [1], [0, 0, 1, 1], [], []>} : vector<2x128xf32>, vector<128x128xf32>, vector<2x128xf32> -> vector<2x128xf32>
    %10 = vector.broadcast %8 : vector<1x128xf32> to vector<2x128xf32>
    %11 = arith.addf %9, %10 : vector<2x128xf32>
    %12 = math.tanh %11 : vector<2x128xf32>
    %c0_10 = arith.constant 0 : index
    %c0_11 = arith.constant 0 : index
    %13 = vector.load %arg6[%c0_10, %c0_11] : memref<4x128xf32, #tpu.memory_space<vmem>>, vector<4x128xf32>
    %c0_12 = arith.constant 0 : index
    %c0_13 = arith.constant 0 : index
    %14 = vector.load %arg7[%c0_12, %c0_13] : memref<4x1xf32, #tpu.memory_space<vmem>>, vector<4x1xf32>
    %cst_14 = arith.constant dense<0.000000e+00> : vector<4x2xf32>
    %15 = tpu.matmul %13, %12, %cst_14 {dimension_numbers = #tpu.dot_dimension_numbers<[1], [1], [0], [0], [0, 0, 1, 0], [], []>} : vector<4x128xf32>, vector<2x128xf32>, vector<4x2xf32> -> vector<4x2xf32>
    %16 = vector.broadcast %14 : vector<4x1xf32> to vector<4x2xf32>
    %17 = arith.addf %15, %16 : vector<4x2xf32>
    %c0_15 = arith.constant 0 : index
    %c0_16 = arith.constant 0 : index
    %18 = vector.load %arg8[%c0_15, %c0_16] : memref<4x2xf32, #tpu.memory_space<vmem>>, vector<4x2xf32>
    tpu.vector_store %arg8[%c0_15, %c0_16], %17 {strides = array<i32>} : memref<4x2xf32, #tpu.memory_space<vmem>>, vector<4x2xf32>,
    return
  }
  func.func @transform_0(%arg0: i32) -> (i32, i32) {
    %c0_i32 = arith.constant 0 : i32
    %c0_i32_0 = arith.constant 0 : i32
    return %arg0, %c0_i32 : i32, i32
  }
  func.func @transform_1(%arg0: i32) -> (i32, i32) {
    %c0_i32 = arith.constant 0 : i32
    %c0_i32_0 = arith.constant 0 : i32
    %c0_i32_1 = arith.constant 0 : i32
    return %c0_i32, %c0_i32_0 : i32, i32
  }
  func.func @transform_2(%arg0: i32) -> (i32, i32) {
    %c0_i32 = arith.constant 0 : i32
    %c0_i32_0 = arith.constant 0 : i32
    %c0_i32_1 = arith.constant 0 : i32
    return %c0_i32, %c0_i32_0 : i32, i32
  }
  func.func @transform_3(%arg0: i32) -> (i32, i32) {
    %c0_i32 = arith.constant 0 : i32
    %c0_i32_0 = arith.constant 0 : i32
    %c0_i32_1 = arith.constant 0 : i32
    return %c0_i32, %c0_i32_0 : i32, i32
  }
  func.func @transform_4(%arg0: i32) -> (i32, i32) {
    %c0_i32 = arith.constant 0 : i32
    %c0_i32_0 = arith.constant 0 : i32
    %c0_i32_1 = arith.constant 0 : i32
    return %c0_i32, %c0_i32_0 : i32, i32
  }
  func.func @transform_5(%arg0: i32) -> (i32, i32) {
    %c0_i32 = arith.constant 0 : i32
    %c0_i32_0 = arith.constant 0 : i32
    %c0_i32_1 = arith.constant 0 : i32
    return %c0_i32, %c0_i32_0 : i32, i32
  }
  func.func @transform_6(%arg0: i32) -> (i32, i32) {
    %c0_i32 = arith.constant 0 : i32
    %c0_i32_0 = arith.constant 0 : i32
    %c0_i32_1 = arith.constant 0 : i32
    return %c0_i32, %c0_i32_0 : i32, i32
  }
  func.func @transform_7(%arg0: i32) -> (i32, i32) {
    %c0_i32 = arith.constant 0 : i32
    %c0_i32_0 = arith.constant 0 : i32
    return %c0_i32, %arg0 : i32, i32
  }
}

</mosaic_0001>

<llo_original>
// kernel: tpu_custom_call.1
$region0: #{tpu_custom_call.1}
  #allocation0 [shape = 'u32[]', space=smem, size = 0x4, offset = 0x4, fixed_abs, tag = 'smem constant byte address 0x4 - core index']
  #allocation1 [shape = 'u32[144,128]{1,0:T(1,128)}', space=vmem, size = 0x12000, scoped, tag = 'internal scratch']
  %s0 = inlined_call_operand.vmem [shape: f32[2,16], index: 0, kind: input, shape index: {}]
  %s1 = inlined_call_operand.hbm [shape: f32[16,128], index: 1, kind: input, shape index: {}]
  %s2 = inlined_call_operand.vmem [shape: f32[1,128], index: 2, kind: input, shape index: {}]
  %s3 = inlined_call_operand.hbm [shape: f32[128,128], index: 3, kind: input, shape index: {}]
  %s4 = inlined_call_operand.vmem [shape: f32[1,128], index: 4, kind: input, shape index: {}]
  %s5 = inlined_call_operand.vmem [shape: f32[4,128], index: 5, kind: input, shape index: {}]
  %s6 = inlined_call_operand.vmem [shape: f32[4,1], index: 6, kind: input, shape index: {}]
  %s7 = inlined_call_operand.vmem [shape: f32[4,2], index: 7, kind: output, shape index: {}]
  %s8 = sld [smem:[#allocation0]]
  $region46: #{tpu_custom_call.1} parent=0
    _
  %s10 = ssub.s32 1, %s8
  %s11 = scalar_select 0, %s10, %s8
  $region1: #{tpu_custom_call.1} parent=0
    #allocation2 [shape = 'u8[8192]{0}', space=vmem, size = 0x2000, scoped, tag = 'input window, operand 1, single buffered']
    #allocation3 [shape = 's32[1]{0}', space=sflag, size = 0x4, scoped, tag = 'scoped memory for tpu_custom_call.1']
    #allocation4 [shape = 'u8[65536]{0}', space=vmem, size = 0x10000, scoped, tag = 'input window, operand 3, single buffered']
    #allocation5 [shape = 's32[1]{0}', space=sflag, size = 0x4, scoped, tag = 'scoped memory for tpu_custom_call.1']
    %12 = vsyncpa [#allocation3], 0
    %13 = vsyncpa [#allocation5], 0
    // Predicated region
    $region2: #{tpu_custom_call.1} parent=1 // pred_check
      _
    $region3: #{tpu_custom_call.1} parent=1 // pred_check_branch
      %15 = sbr.rel (0) target = $region5
    $region4: #{tpu_custom_call.1} parent=1 // pred_region
      _
    $region5: #{tpu_custom_call.1} parent=1 // pred_fallthru
      _
    // Predicated region
    $region6: #{tpu_custom_call.1} parent=1 // pred_check
      _
    $region7: #{tpu_custom_call.1} parent=1 // pred_check_branch
      %17 = sbr.rel (0) target = $region9
    $region8: #{tpu_custom_call.1} parent=1 // pred_region
      %s19 = ssub.s32 256, 256
      %20 = vsyncadd [#allocation3], %s19
      %s21 = sshll.u32 [#allocation2], 4
      %s22 = int_to_ptr.vmem [resolvable:$true] %s21
      %27 = dma.hbm_to_vmem [thread:$0]  %s1, 256, %s22, [#allocation3], 128, 128, 8
    $region9: #{tpu_custom_call.1} parent=1 // pred_fallthru
      _
    // Predicated region
    $region10: #{tpu_custom_call.1} parent=1 // pred_check
      _
    $region11: #{tpu_custom_call.1} parent=1 // pred_check_branch
      %29 = sbr.rel (0) target = $region13
    $region12: #{tpu_custom_call.1} parent=1 // pred_region
      _
    $region13: #{tpu_custom_call.1} parent=1 // pred_fallthru
      _
    // Predicated region
    $region14: #{tpu_custom_call.1} parent=1 // pred_check
      _
    $region15: #{tpu_custom_call.1} parent=1 // pred_check_branch
      %31 = sbr.rel (0) target = $region17
    $region16: #{tpu_custom_call.1} parent=1 // pred_region
      %s33 = ssub.s32 2048, 2048
      %34 = vsyncadd [#allocation5], %s33
      %s35 = sshll.u32 [#allocation4], 4
      %s36 = int_to_ptr.vmem [resolvable:$true] %s35
      %41 = dma.hbm_to_vmem [thread:$0]  %s3, 2048, %s36, [#allocation5], 128, 128, 8
    $region17: #{tpu_custom_call.1} parent=1 // pred_fallthru
      _
    // Predicated region
    $region18: #{tpu_custom_call.1} parent=1 // pred_check
      _
    $region19: #{tpu_custom_call.1} parent=1 // pred_check_branch
      %43 = sbr.rel (0) target = $region21
    $region20: #{tpu_custom_call.1} parent=1 // pred_region
      _
    $region21: #{tpu_custom_call.1} parent=1 // pred_fallthru
      _
    // Predicated region
    $region22: #{tpu_custom_call.1} parent=1 // pred_check
      _
    $region23: #{tpu_custom_call.1} parent=1 // pred_check_branch
      %45 = sbr.rel (0) target = $region25
    $region24: #{tpu_custom_call.1} parent=1 // pred_region
      _
    $region25: #{tpu_custom_call.1} parent=1 // pred_fallthru
      _
    // Predicated region
    $region26: #{tpu_custom_call.1} parent=1 // pred_check
      _
    $region27: #{tpu_custom_call.1} parent=1 // pred_check_branch
      %47 = sbr.rel (0) target = $region29
    $region28: #{tpu_custom_call.1} parent=1 // pred_region
      _
    $region29: #{tpu_custom_call.1} parent=1 // pred_fallthru
      _
    // Predicated region
    $region30: #{tpu_custom_call.1} parent=1 // pred_check
      _
    $region31: #{tpu_custom_call.1} parent=1 // pred_check_branch
      %49 = sbr.rel (0) target = $region33
    $region32: #{tpu_custom_call.1} parent=1 // pred_region
      %50 = dma.done [#allocation3], 256
    $region33: #{tpu_custom_call.1} parent=1 // pred_fallthru
      _
    // Predicated region
    $region34: #{tpu_custom_call.1} parent=1 // pred_check
      _
    $region35: #{tpu_custom_call.1} parent=1 // pred_check_branch
      %52 = sbr.rel (0) target = $region37
    $region36: #{tpu_custom_call.1} parent=1 // pred_region
      %53 = dma.done [#allocation5], 2048
    $region37: #{tpu_custom_call.1} parent=1 // pred_fallthru
      _
    %v54 = vld [vmem:[%s0] sm:$0x3]
    %v55 = vld [vmem:[#allocation2] sm:$0xff]
    %v56 = vld [vmem:[#allocation2 + $0x8] sm:$0xff]
    %v57 = vld [vmem:[%s2] sm:$0x1]
    %v59 = vlaneseq
    %v60 = vshrl.u32 %v59, 7
    %v61 = vsub.s32 0, %v60
    %v62 = vrot.slane %v57, %v61
    %vm64 = vcmask 130048
    %v66 = vsel %vm64, %v54, 0
    %68 = vmatprep.subr.mxu0 0.0
    %69 = vmatpush1.msra.mxu0 0.0
    %70 = vmatprep.subr.mxu0 0.0
    %71 = vmatpush1.msra.mxu0 0.0
    %72 = vmatprep.subr.mxu0 0.0
    %73 = vmatpush1.msra.mxu0 0.0
    %74 = vmatprep.subr.mxu0 0.0
    %75 = vmatpush1.msra.mxu0 0.0
    %76 = vmatprep.subr.mxu0 0.0
    %77 = vmatpush1.msra.mxu0 0.0
    %78 = vmatprep.subr.mxu0 0.0
    %79 = vmatpush1.msra.mxu0 0.0
    %80 = vmatprep.subr.mxu0 0.0
    %81 = vmatpush1.msra.mxu0 0.0
    %82 = vmatprep.subr.mxu0 0.0
    %83 = vmatpush1.msra.mxu0 0.0
    %84 = vmatprep.subr.mxu0 0.0
    %85 = vmatpush1.msra.mxu0 0.0
    %86 = vmatprep.subr.mxu0 0.0
    %87 = vmatpush1.msra.mxu0 0.0
    %88 = vmatprep.subr.mxu0 0.0
    %89 = vmatpush1.msra.mxu0 0.0
    %90 = vmatprep.subr.mxu0 0.0
    %91 = vmatpush1.msra.mxu0 0.0
    %92 = vmatprep.subr.mxu0 0.0
    %93 = vmatpush1.msra.mxu0 0.0
    %94 = vmatprep.subr.mxu0 0.0
    %95 = vmatpush1.msra.mxu0 0.0
    %96 = vmatprep.subr.mxu0 0.0
    %97 = vmatpush1.msra.mxu0 %v56
    %98 = vmatprep.subr.mxu0 0.0
    %99 = vmatpush1.msra.mxu0 %v55
    %100 = vmatprep.subr.mxu0 0.0
    %101 = vmatpush2.msra.mxu0 0.0
    %102 = vmatprep.subr.mxu0 0.0
    %103 = vmatpush2.msra.mxu0 0.0
    %104 = vmatprep.subr.mxu0 0.0
    %105 = vmatpush2.msra.mxu0 0.0
    %106 = vmatprep.subr.mxu0 0.0
    %107 = vmatpush2.msra.mxu0 0.0
    %108 = vmatprep.subr.mxu0 0.0
    %109 = vmatpush2.msra.mxu0 0.0
    %110 = vmatprep.subr.mxu0 0.0
    %111 = vmatpush2.msra.mxu0 0.0
    %112 = vmatprep.subr.mxu0 0.0
    %113 = vmatpush2.msra.mxu0 0.0
    %114 = vmatprep.subr.mxu0 0.0
    %115 = vmatpush2.msra.mxu0 0.0
    %116 = vmatprep.subr.mxu0 0.0
    %117 = vmatpush2.msra.mxu0 0.0
    %118 = vmatprep.subr.mxu0 0.0
    %119 = vmatpush2.msra.mxu0 0.0
    %120 = vmatprep.subr.mxu0 0.0
    %121 = vmatpush2.msra.mxu0 0.0
    %122 = vmatprep.subr.mxu0 0.0
    %123 = vmatpush2.msra.mxu0 0.0
    %124 = vmatprep.subr.mxu0 0.0
    %125 = vmatpush2.msra.mxu0 0.0
    %126 = vmatprep.subr.mxu0 0.0
    %127 = vmatpush2.msra.mxu0 0.0
    %128 = vmatprep.subr.mxu0 0.0
    %129 = vmatpush2.msra.mxu0 0.0
    %130 = vmatprep.subr.mxu0 0.0
    %131 = vmatpush2.msra.mxu0 0.0
    %132 = vmatprep.mubr.f32.mxu0 0.0
    %133 = vmatmul.mubr.f32.gmra.mxu0 %v66
    %v134 = vpop.f32.mrf.mxu0
    %v135 = vadd.f32 %v62, %v134
    %v136 = vpop.f32.mrf.mxu0
    %137 = vdwg.mxu0
    %v138 = vtanh.pop %v135
    %v139 = vld [vmem:[#allocation4] sm:$0xff]
    %v140 = vld [vmem:[#allocation4 + $0x8] sm:$0xff]
    %v141 = vld [vmem:[#allocation4 + $0x10] sm:$0xff]
    %v142 = vld [vmem:[#allocation4 + $0x18] sm:$0xff]
    %v143 = vld [vmem:[#allocation4 + $0x20] sm:$0xff]
    %v144 = vld [vmem:[#allocation4 + $0x28] sm:$0xff]
    %v145 = vld [vmem:[#allocation4 + $0x30] sm:$0xff]
    %v146 = vld [vmem:[#allocation4 + $0x38] sm:$0xff]
    %v147 = vld [vmem:[#allocation4 + $0x40] sm:$0xff]
    %v148 = vld [vmem:[#allocation4 + $0x48] sm:$0xff]
    %v149 = vld [vmem:[#allocation4 + $0x50] sm:$0xff]
    %v150 = vld [vmem:[#allocation4 + $0x58] sm:$0xff]
    %v151 = vld [vmem:[#allocation4 + $0x60] sm:$0xff]
    %v152 = vld [vmem:[#allocation4 + $0x68] sm:$0xff]
    %v153 = vld [vmem:[#allocation4 + $0x70] sm:$0xff]
    %v154 = vld [vmem:[#allocation4 + $0x78] sm:$0xff]
    %v155 = vld [vmem:[%s4] sm:$0x1]
    %v157 = vlaneseq
    %v158 = vshrl.u32 %v157, 7
    %v159 = vsub.s32 0, %v158
    %v160 = vrot.slane %v155, %v159
    %162 = vmatprep.subr.mxu0 0.0
    %163 = vmatpush1.msra.mxu0 %v154
    %164 = vmatprep.subr.mxu0 0.0
    %165 = vmatpush1.msra.mxu0 %v153
    %166 = vmatprep.subr.mxu0 0.0
    %167 = vmatpush1.msra.mxu0 %v152
    %168 = vmatprep.subr.mxu0 0.0
    %169 = vmatpush1.msra.mxu0 %v151
    %170 = vmatprep.subr.mxu0 0.0
    %171 = vmatpush1.msra.mxu0 %v150
    %172 = vmatprep.subr.mxu0 0.0
    %173 = vmatpush1.msra.mxu0 %v149
    %174 = vmatprep.subr.mxu0 0.0
    %175 = vmatpush1.msra.mxu0 %v148
    %176 = vmatprep.subr.mxu0 0.0
    %177 = vmatpush1.msra.mxu0 %v147
    %178 = vmatprep.subr.mxu0 0.0
    %179 = vmatpush1.msra.mxu0 %v146
    %180 = vmatprep.subr.mxu0 0.0
    %181 = vmatpush1.msra.mxu0 %v145
    %182 = vmatprep.subr.mxu0 0.0
    %183 = vmatpush1.msra.mxu0 %v144
    %184 = vmatprep.subr.mxu0 0.0
    %185 = vmatpush1.msra.mxu0 %v143
    %186 = vmatprep.subr.mxu0 0.0
    %187 = vmatpush1.msra.mxu0 %v142
    %188 = vmatprep.subr.mxu0 0.0
    %189 = vmatpush1.msra.mxu0 %v141
    %190 = vmatprep.subr.mxu0 0.0
    %191 = vmatpush1.msra.mxu0 %v140
    %192 = vmatprep.subr.mxu0 0.0
    %193 = vmatpush1.msra.mxu0 %v139
    %194 = vmatprep.subr.mxu0 0.0
    %195 = vmatpush2.msra.mxu0 0.0
    %196 = vmatprep.subr.mxu0 0.0
    %197 = vmatpush2.msra.mxu0 0.0
    %198 = vmatprep.subr.mxu0 0.0
    %199 = vmatpush2.msra.mxu0 0.0
    %200 = vmatprep.subr.mxu0 0.0
    %201 = vmatpush2.msra.mxu0 0.0
    %202 = vmatprep.subr.mxu0 0.0
    %203 = vmatpush2.msra.mxu0 0.0
    %204 = vmatprep.subr.mxu0 0.0
    %205 = vmatpush2.msra.mxu0 0.0
    %206 = vmatprep.subr.mxu0 0.0
    %207 = vmatpush2.msra.mxu0 0.0
    %208 = vmatprep.subr.mxu0 0.0
    %209 = vmatpush2.msra.mxu0 0.0
    %210 = vmatprep.subr.mxu0 0.0
    %211 = vmatpush2.msra.mxu0 0.0
    %212 = vmatprep.subr.mxu0 0.0
    %213 = vmatpush2.msra.mxu0 0.0
    %214 = vmatprep.subr.mxu0 0.0
    %215 = vmatpush2.msra.mxu0 0.0
    %216 = vmatprep.subr.mxu0 0.0
    %217 = vmatpush2.msra.mxu0 0.0
    %218 = vmatprep.subr.mxu0 0.0
    %219 = vmatpush2.msra.mxu0 0.0
    %220 = vmatprep.subr.mxu0 0.0
    %221 = vmatpush2.msra.mxu0 0.0
    %222 = vmatprep.subr.mxu0 0.0
    %223 = vmatpush2.msra.mxu0 0.0
    %224 = vmatprep.subr.mxu0 0.0
    %225 = vmatpush2.msra.mxu0 0.0
    %226 = vmatprep.mubr.f32.mxu0 0.0
    %227 = vmatmul.mubr.f32.gmra.mxu0 %v138
    %v228 = vpop.f32.mrf.mxu0
    %v229 = vadd.f32 %v160, %v228
    %v230 = vpop.f32.mrf.mxu0
    %231 = vdwg.mxu0
    %v232 = vtanh.pop %v229
    %v233 = vld [vmem:[%s5] sm:$0xf]
    %v234 = vld [vmem:[%s6] sm:$0xf]
    %236 = vset.pattern.permute.xlu0 0
    %237 = vperm.xlu0 %236, %v234
    %v238 = vpop.permute.xlu0 %237
    %240 = vmatprep.subr.mxu0 0.0
    %241 = vmatpush1.xpose.msra.mxu0 0.0
    %242 = vmatprep.subr.mxu0 0.0
    %243 = vmatpush1.xpose.msra.mxu0 0.0
    %244 = vmatprep.subr.mxu0 0.0
    %245 = vmatpush1.xpose.msra.mxu0 0.0
    %246 = vmatprep.subr.mxu0 0.0
    %247 = vmatpush1.xpose.msra.mxu0 0.0
    %248 = vmatprep.subr.mxu0 0.0
    %249 = vmatpush1.xpose.msra.mxu0 0.0
    %250 = vmatprep.subr.mxu0 0.0
    %251 = vmatpush1.xpose.msra.mxu0 0.0
    %252 = vmatprep.subr.mxu0 0.0
    %253 = vmatpush1.xpose.msra.mxu0 0.0
    %254 = vmatprep.subr.mxu0 0.0
    %255 = vmatpush1.xpose.msra.mxu0 0.0
    %256 = vmatprep.subr.mxu0 0.0
    %257 = vmatpush1.xpose.msra.mxu0 0.0
    %258 = vmatprep.subr.mxu0 0.0
    %259 = vmatpush1.xpose.msra.mxu0 0.0
    %260 = vmatprep.subr.mxu0 0.0
    %261 = vmatpush1.xpose.msra.mxu0 0.0
    %262 = vmatprep.subr.mxu0 0.0
    %263 = vmatpush1.xpose.msra.mxu0 0.0
    %264 = vmatprep.subr.mxu0 0.0
    %265 = vmatpush1.xpose.msra.mxu0 0.0
    %266 = vmatprep.subr.mxu0 0.0
    %267 = vmatpush1.xpose.msra.mxu0 0.0
    %268 = vmatprep.subr.mxu0 0.0
    %269 = vmatpush1.xpose.msra.mxu0 0.0
    %270 = vmatprep.subr.mxu0 0.0
    %271 = vmatpush1.xpose.msra.mxu0 %v232
    %272 = vmatprep.subr.mxu0 0.0
    %273 = vmatpush2.xpose.msra.mxu0 0.0
    %274 = vmatprep.subr.mxu0 0.0
    %275 = vmatpush2.xpose.msra.mxu0 0.0
    %276 = vmatprep.subr.mxu0 0.0
    %277 = vmatpush2.xpose.msra.mxu0 0.0
    %278 = vmatprep.subr.mxu0 0.0
    %279 = vmatpush2.xpose.msra.mxu0 0.0
    %280 = vmatprep.subr.mxu0 0.0
    %281 = vmatpush2.xpose.msra.mxu0 0.0
    %282 = vmatprep.subr.mxu0 0.0
    %283 = vmatpush2.xpose.msra.mxu0 0.0
    %284 = vmatprep.subr.mxu0 0.0
    %285 = vmatpush2.xpose.msra.mxu0 0.0
    %286 = vmatprep.subr.mxu0 0.0
    %287 = vmatpush2.xpose.msra.mxu0 0.0
    %288 = vmatprep.subr.mxu0 0.0
    %289 = vmatpush2.xpose.msra.mxu0 0.0
    %290 = vmatprep.subr.mxu0 0.0
    %291 = vmatpush2.xpose.msra.mxu0 0.0
    %292 = vmatprep.subr.mxu0 0.0
    %293 = vmatpush2.xpose.msra.mxu0 0.0
    %294 = vmatprep.subr.mxu0 0.0
    %295 = vmatpush2.xpose.msra.mxu0 0.0
    %296 = vmatprep.subr.mxu0 0.0
    %297 = vmatpush2.xpose.msra.mxu0 0.0
    %298 = vmatprep.subr.mxu0 0.0
    %299 = vmatpush2.xpose.msra.mxu0 0.0
    %300 = vmatprep.subr.mxu0 0.0
    %301 = vmatpush2.xpose.msra.mxu0 0.0
    %302 = vmatprep.subr.mxu0 0.0
    %303 = vmatpush2.xpose.msra.mxu0 0.0
    %304 = vmatprep.mubr.f32.mxu0 0.0
    %305 = vmatmul.mubr.f32.gmra.mxu0 %v233
    %v306 = vpop.f32.mrf.mxu0
    %v307 = vadd.f32 %v238, %v306
    %v308 = vpop.f32.mrf.mxu0
    %309 = vdwg.mxu0
    %vm310 = vcmask 11264
    %311 = vst.msk [vmem:[%s7] sm:$0xf] %vm310, %v307
    // Predicated region
    $region38: #{tpu_custom_call.1} parent=1 // pred_check
      _
    $region39: #{tpu_custom_call.1} parent=1 // pred_check_branch
      %313 = sbr.rel (0) target = $region41
    $region40: #{tpu_custom_call.1} parent=1 // pred_region
      _
    $region41: #{tpu_custom_call.1} parent=1 // pred_fallthru
      _
    // Predicated region
    $region42: #{tpu_custom_call.1} parent=1 // pred_check
      _
    $region43: #{tpu_custom_call.1} parent=1 // pred_check_branch
      %315 = sbr.rel (0) target = $region45
    $region44: #{tpu_custom_call.1} parent=1 // pred_region
      _
    $region45: #{tpu_custom_call.1} parent=1 // pred_fallthru
      _
    %316 = vsyncpa [#allocation3], 1
    %317 = vsyncpa [#allocation5], 1

</llo_original>
